<compile_context>
chip_gen: v6e
topology: v6e:2x2x1
jax: 0.10.0
libtpu: 0.0.40
codegen_flags: <defaults>
</compile_context>

<pallas_src>
import math

import jax
import jax.numpy as jnp
from jax.experimental import pallas as pl
from jax.experimental.pallas import tpu as pltpu


def _round_up(v, m):
    return ((v + m - 1) // m) * m


def masknet_forward(
    x,
    W,
    b,
    *,
    target_block_bytes=2 * 1024 * 1024,   # ~85% HBM-roofline plateau; fits v5e easily
    max_lane_width=1024,
    compute_dtype=None,                   # None -> f32 (safe on v5e); bf16 ok on v6e/v7x
    buffer_count=2,                       # try 3 on v7x
):
    """x: (batch, input_dim); W, b: (1, input_dim).  Returns (batch, input_dim)."""
    batch, input_dim = x.shape
    assert W.shape == (1, input_dim) and b.shape == (1, input_dim)

    if compute_dtype is None:
        compute_dtype = jnp.float32

    itemsize = x.dtype.itemsize
    total = batch * input_dim
    lane_base = 128

    # Hoist softplus out of the per-tile hot path; keep params in float32
    # (single (1, L) row -> negligible VMEM/DMA, better numerics for bf16 I/O).
    neg_sp_w = -jax.nn.softplus(W.astype(jnp.float32))
    b_f32 = b.astype(jnp.float32)

    # ---- Lane-dense repack (unconditional via padding) ----------------------
    lane = input_dim
    if input_dim % lane_base != 0:
        l0 = (input_dim * lane_base) // math.gcd(input_dim, lane_base)  # lcm(D, 128)
        if l0 * itemsize <= 4 * 1024 * 1024:  # guard against pathological huge lcm
            lane = l0
            while lane * 2 <= max_lane_width and total >= lane * 2 * 8:
                lane *= 2
    repacked = lane != input_dim

    if repacked:
        rows = pl.cdiv(total, lane)
        padded_total = rows * lane
        flat = x.reshape(-1)
        if padded_total != total:
            flat = jnp.pad(flat, (0, padded_total - total))
        xk = flat.reshape(rows, lane)       # row-major: feature index = col % D
        reps = lane // input_dim
        nswk = jnp.tile(neg_sp_w, (1, reps))
        bk = jnp.tile(b_f32, (1, reps))
    else:
        rows = batch
        xk = x
        nswk = neg_sp_w
        bk = b_f32

    # ---- Row-tile sizing -----------------------------------------------------
    # Native sublane packing multiple: 8 for f32, 16 for bf16, 32 for int8/fp8.
    sub = max(8, 32 // itemsize)
    bytes_per_row = lane * itemsize
    tb = max(1, target_block_bytes // max(1, bytes_per_row))
    if rows > sub:
        # Guarantee grid length >= 2 (so both v7x TCs get work), and keep tb on
        # the dtype's sublane boundary.
        half = _round_up(pl.cdiv(rows, 2), sub)
        tb = min(tb, half)
        tb = max(sub, (tb // sub) * sub)
        tb = min(tb, rows)
    else:
        tb = rows
    grid = (pl.cdiv(rows, tb),)

    # ---- VMEM accounting: what the pipeline actually allocates ---------------
    x_block_bytes = tb * lane * itemsize
    out_block_bytes = tb * lane * itemsize
    param_bytes = 2 * 2 * lane * 4          # two (1, L) f32 params, double-buffered
    vmem_limit = (buffer_count * (x_block_bytes + out_block_bytes)
                  + param_bytes + (2 << 20))  # ~2 MiB margin for internal scratch
    vmem_limit = int(min(max(vmem_limit, 4 << 20), 100 << 20))

    # ---- Kernel ---------------------------------------------------------------
    def _masknet_kernel(x_ref, nsw_ref, b_ref, o_ref):
        xv = x_ref[...].astype(compute_dtype)       # (TB, L)
        nsw = nsw_ref[...].astype(compute_dtype)    # (1, L), broadcasts
        bb = b_ref[...].astype(compute_dtype)       # (1, L), broadcasts
        # jax.nn.sigmoid is the numerically stable logistic.
        o_ref[...] = jax.nn.sigmoid(nsw * (xv - bb)).astype(o_ref.dtype)

    def _xspec():
        if buffer_count != 2:
            return pl.BlockSpec((tb, lane), lambda i: (i, 0),
                                pipeline_mode=pl.Buffered(buffer_count))
        return pl.BlockSpec((tb, lane), lambda i: (i, 0))

    cost = pl.CostEstimate(
        flops=3 * rows * lane,
        transcendentals=rows * lane,
        bytes_accessed=2 * rows * lane * itemsize + 2 * lane * 4,
    )

    out = pl.pallas_call(
        _masknet_kernel,
        out_shape=jax.ShapeDtypeStruct((rows, lane), x.dtype),
        grid=grid,
        in_specs=[
            _xspec(),
            pl.BlockSpec((1, lane), lambda i: (0, 0)),   # resident across grid
            pl.BlockSpec((1, lane), lambda i: (0, 0)),   # resident across grid
        ],
        out_specs=_xspec(),
        compiler_params=pltpu.CompilerParams(
            dimension_semantics=("parallel",),            # megacore-shardable on v7x
            vmem_limit_bytes=vmem_limit,
        ),
        cost_estimate=cost,
    )(xk, nswk, bk)

    if repacked:
        return out.reshape(-1)[:total].reshape(batch, input_dim)
    return out


def masknet_reference(x, W, b):
    return jax.nn.sigmoid(-jax.nn.softplus(W) * (x - b))


if __name__ == "__main__":
    key = jax.random.PRNGKey(0)
    kx, kw, kb = jax.random.split(key, 3)

    # D=48 (not a multiple of 128) exercises the lane-dense repack path; the
    # small target block below forces a multi-step pipelined grid even at this
    # size (production default is ~2 MiB blocks + generation-tuned options).
    batch, input_dim = 512, 48

    x = jax.random.normal(kx, (batch, input_dim), dtype=jnp.float32)
    # Module __init__ uses zeros; small random values exercise the math while
    # staying deterministic.
    W = 0.1 * jax.random.normal(kw, (1, input_dim), dtype=jnp.float32)
    b = 0.1 * jax.random.normal(kb, (1, input_dim), dtype=jnp.float32)

    out = masknet_forward(x, W, b, target_block_bytes=32 * 1024)
    out = jax.block_until_ready(out)
    ref = masknet_reference(x, W, b)
    assert out.shape == (batch, input_dim)
    assert jnp.allclose(out, ref, atol=1e-5, rtol=1e-5), "mismatch vs reference"

    # Awkward batch (total not a multiple of lcm(D,128)) exercises the
    # pad-and-slice lane-dense path (previously a masked-store fallback).
    batch2 = 100
    x2 = jax.random.normal(kx, (batch2, input_dim), dtype=jnp.float32)
    out2 = jax.block_until_ready(masknet_forward(x2, W, b))
    ref2 = masknet_reference(x2, W, b)
    assert out2.shape == (batch2, input_dim)
    assert jnp.allclose(out2, ref2, atol=1e-5, rtol=1e-5), "mismatch vs reference (padded path)"

    print("KERNEL_OK")
</pallas_src>

<mosaic_0001>
module attributes {stable_mosaic.version = 11 : i64} {
  func.func @_masknet_kernel(%arg0: i32, %arg1: memref<8x768xf32, #tpu.memory_space<vmem>>, %arg2: memref<1x768xf32, #tpu.memory_space<vmem>>, %arg3: memref<1x768xf32, #tpu.memory_space<vmem>>, %arg4: memref<8x768xf32, #tpu.memory_space<vmem>>) attributes {dimension_semantics = [#tpu.dimension_semantics<parallel>], iteration_bounds = array<i64: 4>, scalar_prefetch = 0 : i64, scratch_operands = 0 : i64, tpu.core_type = #tpu.core_type<tc>, window_params = [{transform_indices = @transform_0, window_bounds = array<i64: 8, 768>}, {pipeline_mode = #tpu.pipeline_mode<synchronous>, transform_indices = @transform_1, window_bounds = array<i64: 1, 768>}, {pipeline_mode = #tpu.pipeline_mode<synchronous>, transform_indices = @transform_2, window_bounds = array<i64: 1, 768>}, {transform_indices = @transform_3, window_bounds = array<i64: 8, 768>}]} {
    %c0 = arith.constant 0 : index
    %c0_0 = arith.constant 0 : index
    %0 = vector.load %arg1[%c0, %c0_0] : memref<8x768xf32, #tpu.memory_space<vmem>>, vector<8x768xf32>
    %c0_1 = arith.constant 0 : index
    %c0_2 = arith.constant 0 : index
    %1 = vector.load %arg2[%c0_1, %c0_2] : memref<1x768xf32, #tpu.memory_space<vmem>>, vector<1x768xf32>
    %c0_3 = arith.constant 0 : index
    %c0_4 = arith.constant 0 : index
    %2 = vector.load %arg3[%c0_3, %c0_4] : memref<1x768xf32, #tpu.memory_space<vmem>>, vector<1x768xf32>
    %3 = vector.broadcast %2 : vector<1x768xf32> to vector<8x768xf32>
    %4 = arith.subf %0, %3 : vector<8x768xf32>
    %5 = vector.broadcast %1 : vector<1x768xf32> to vector<8x768xf32>
    %6 = arith.mulf %5, %4 : vector<8x768xf32>
    %7 = arith.negf %6 : vector<8x768xf32>
    %8 = math.exp %7 : vector<8x768xf32>
    %cst = arith.constant 1.000000e+00 : f32
    %9 = vector.broadcast %cst : f32 to vector<8x768xf32>
    %10 = arith.addf %9, %8 : vector<8x768xf32>
    %11 = arith.divf %9, %10 : vector<8x768xf32>
    %c0_5 = arith.constant 0 : index
    %c0_6 = arith.constant 0 : index
    %12 = vector.load %arg4[%c0_5, %c0_6] : memref<8x768xf32, #tpu.memory_space<vmem>>, vector<8x768xf32>
    tpu.vector_store %arg4[%c0_5, %c0_6], %11 {strides = array<i32>} : memref<8x768xf32, #tpu.memory_space<vmem>>, vector<8x768xf32>,
    return
  }
  func.func @transform_0(%arg0: i32) -> (i32, i32) {
    %c0_i32 = arith.constant 0 : i32
    %c0_i32_0 = arith.constant 0 : i32
    return %arg0, %c0_i32 : i32, i32
  }
  func.func @transform_1(%arg0: i32) -> (i32, i32) {
    %c0_i32 = arith.constant 0 : i32
    %c0_i32_0 = arith.constant 0 : i32
    %c0_i32_1 = arith.constant 0 : i32
    return %c0_i32, %c0_i32_0 : i32, i32
  }
  func.func @transform_2(%arg0: i32) -> (i32, i32) {
    %c0_i32 = arith.constant 0 : i32
    %c0_i32_0 = arith.constant 0 : i32
    %c0_i32_1 = arith.constant 0 : i32
    return %c0_i32, %c0_i32_0 : i32, i32
  }
  func.func @transform_3(%arg0: i32) -> (i32, i32) {
    %c0_i32 = arith.constant 0 : i32
    %c0_i32_0 = arith.constant 0 : i32
    return %arg0, %c0_i32 : i32, i32
  }
}

</mosaic_0001>

<llo_original>
// kernel: tpu_custom_call.1
$region0: #{tpu_custom_call.1}
  #allocation0 [shape = 'u32[]', space=smem, size = 0x4, offset = 0x4, fixed_abs, tag = 'smem constant byte address 0x4 - core index']
  #allocation1 [shape = 'u32[144,128]{1,0:T(1,128)}', space=vmem, size = 0x12000, scoped, tag = 'internal scratch']
  %s0 = inlined_call_operand.hbm [shape: f32[32,768], index: 0, kind: input, shape index: {}]
  %s1 = inlined_call_operand.hbm [shape: f32[1,768], index: 1, kind: input, shape index: {}]
  %s2 = inlined_call_operand.hbm [shape: f32[1,768], index: 2, kind: input, shape index: {}]
  %s3 = inlined_call_operand.hbm [shape: f32[32,768], index: 3, kind: output, shape index: {}]
  %s4 = sld [smem:[#allocation0]]
  $region57: #{tpu_custom_call.1} parent=0
    _
  %s6 = ssub.s32 1, %s4
  %s7 = scalar_select 0, %s6, %s4
  $region1: #{tpu_custom_call.1} parent=0
    #allocation2 [shape = 'u8[49152]{0}', space=vmem, size = 0xc000, scoped, tag = 'input window, operand 0']
    #allocation3 [shape = 's32[2]{0}', space=sflag, size = 0x8, scoped, tag = 'scoped memory for tpu_custom_call.1']
    #allocation4 [shape = 's32[2]{0}', space=sflag, size = 0x8, scoped, tag = 'scoped memory for tpu_custom_call.1']
    #allocation5 [shape = 'u8[3072]{0}', space=vmem, size = 0xc00, scoped, tag = 'input window, operand 1, single buffered']
    #allocation6 [shape = 's32[1]{0}', space=sflag, size = 0x4, scoped, tag = 'scoped memory for tpu_custom_call.1']
    #allocation7 [shape = 'u8[3072]{0}', space=vmem, size = 0xc00, scoped, tag = 'input window, operand 2, single buffered']
    #allocation8 [shape = 'u8[49152]{0}', space=vmem, size = 0xc000, scoped, tag = 'output window, operand 0']
    %8 = vsyncpa [#allocation3], 0
    %s9 = scalar_lea.sflag [#allocation3], 1
    %10 = vsyncpa %s9, 0
    %11 = vsyncpa [#allocation6], 0
    %12 = vsyncpa [#allocation4], 0
    %s13 = scalar_lea.sflag [#allocation4], 1
    %14 = vsyncpa %s13, 0
    loop: start=0, step=1, limit=6
    $region2: #{tpu_custom_call.1} parent=1 // loop_pre_header
      _
    $region3: #{tpu_custom_call.1} parent=1 // loop_header
      %s16 = sphi 0, %s20
      %p17 = scmp.ge.s32.totalorder %s16, 6
      %s26 = sphi 0, %s28
      %s29 = sphi 0, %s26
      %s30 = sphi 0, %s29
      %s46 = sphi 0, %s30
      %s50 = sphi 0, %s50
      %s52 = sphi 0, %s50
      %s53 = sphi 0, %s52
      %s67 = sphi 0, %s53
      %s71 = sphi 0, %s71
      %s73 = sphi 0, %s71
      %s74 = sphi 0, %s73
      %s88 = sphi 0, %s74
      %s94 = sphi 0, %s96
      %s97 = sphi 0, %s94
      %s98 = sphi 0, %s97
      %s114 = sphi 0, %s98
    $region4: #{tpu_custom_call.1} parent=1 // loop_header_branch
      %19 = sbr.rel (%p17) target = $region8
    $region5: #{tpu_custom_call.1} parent=1 // loop_body
      %s21 = ssub.s32 %s16, 1
      %s22 = ssub.s32 %s16, 2
      %s23 = sadd.s32 %s16, 1
      %s24 = ssub.s32 %s16, %s23
      %p25 = scmp.eq.s32.totalorder %s24, 0
      %s27 = sadd.s32 %s26, 1
      %s28 = scalar_select %p25, %s26, %s27
      %p31 = pneg %p25
      %p32 = scmp.eq.s32.totalorder %s16, 3
      %p33 = por %p31, %p32
      %p34 = scmp.ne.s32.totalorder %s26, %s29
      %p35 = scmp.eq.s32.totalorder %s16, 0
      %p36 = por %p34, %p35
      %p37 = scmp.ne.s32.totalorder %s26, %s29
      %p38 = scmp.eq.s32.totalorder %s21, 3
      %p39 = por %p37, %p38
      %p40 = scmp.ne.s32.totalorder %s29, %s30
      %p41 = scmp.eq.s32.totalorder %s21, 0
      %p42 = por %p40, %p41
      %p43 = scmp.ne.s32.totalorder %s29, %s30
      %p44 = scmp.eq.s32.totalorder %s22, 3
      %p45 = por %p43, %p44
      %p47 = scmp.ne.s32.totalorder %s30, %s46
      %p48 = scmp.eq.s32.totalorder %s22, 0
      %p49 = por %p47, %p48
      %s51 = sadd.s32 %s50, 1
      %p54 = scmp.eq.s32.totalorder %s16, 3
      %p55 = scmp.ne.s32.totalorder %s50, %s52
      %p56 = scmp.eq.s32.totalorder %s16, 0
      %p57 = por %p55, %p56
      %p58 = scmp.ne.s32.totalorder %s50, %s52
      %p59 = scmp.eq.s32.totalorder %s21, 3
      %p60 = por %p58, %p59
      %p61 = scmp.ne.s32.totalorder %s52, %s53
      %p62 = scmp.eq.s32.totalorder %s21, 0
      %p63 = por %p61, %p62
      %p64 = scmp.ne.s32.totalorder %s52, %s53
      %p65 = scmp.eq.s32.totalorder %s22, 3
      %p66 = por %p64, %p65
      %p68 = scmp.ne.s32.totalorder %s53, %s67
      %p69 = scmp.eq.s32.totalorder %s22, 0
      %p70 = por %p68, %p69
      %s72 = sadd.s32 %s71, 1
      %p75 = scmp.eq.s32.totalorder %s16, 3
      %p76 = scmp.ne.s32.totalorder %s71, %s73
      %p77 = scmp.eq.s32.totalorder %s16, 0
      %p78 = por %p76, %p77
      %p79 = scmp.ne.s32.totalorder %s71, %s73
      %p80 = scmp.eq.s32.totalorder %s21, 3
      %p81 = por %p79, %p80
      %p82 = scmp.ne.s32.totalorder %s73, %s74
      %p83 = scmp.eq.s32.totalorder %s21, 0
      %p84 = por %p82, %p83
      %p85 = scmp.ne.s32.totalorder %s73, %s74
      %p86 = scmp.eq.s32.totalorder %s22, 3
      %p87 = por %p85, %p86
      %p89 = scmp.ne.s32.totalorder %s74, %s88
      %p90 = scmp.eq.s32.totalorder %s22, 0
      %p91 = por %p89, %p90
      %s92 = ssub.s32 %s16, %s23
      %p93 = scmp.eq.s32.totalorder %s92, 0
      %s95 = sadd.s32 %s94, 1
      %s96 = scalar_select %p93, %s94, %s95
      %p99 = pneg %p93
      %p100 = scmp.eq.s32.totalorder %s16, 3
      %p101 = por %p99, %p100
      %p102 = scmp.ne.s32.totalorder %s94, %s97
      %p103 = scmp.eq.s32.totalorder %s16, 0
      %p104 = por %p102, %p103
      %p105 = scmp.ne.s32.totalorder %s94, %s97
      %p106 = scmp.eq.s32.totalorder %s21, 3
      %p107 = por %p105, %p106
      %p108 = scmp.ne.s32.totalorder %s97, %s98
      %p109 = scmp.eq.s32.totalorder %s21, 0
      %p110 = por %p108, %p109
      %p111 = scmp.ne.s32.totalorder %s97, %s98
      %p112 = scmp.eq.s32.totalorder %s22, 3
      %p113 = por %p111, %p112
      %p115 = scmp.ne.s32.totalorder %s98, %s114
      %p116 = scmp.eq.s32.totalorder %s22, 0
      %p117 = por %p115, %p116
      %p118 = scmp.le.s32.totalorder 1, %s16
      %p119 = scmp.lt.s32.totalorder %s16, 5
      %p120 = pnand %p118, %p119
      %p121 = pneg %p120
      // Predicated region
      $region9: #{tpu_custom_call.1} parent=5 // pred_check
        _
      $region10: #{tpu_custom_call.1} parent=5 // pred_check_branch
        %123 = sbr.rel (%p120) target = $region12
      $region11: #{tpu_custom_call.1} parent=5 // pred_region
        %s124 = ssub.s32 %s16, 1
        // Predicated region
        $region13: #{tpu_custom_call.1} parent=11 // pred_check
          %p125 = pneg %p63
        $region14: #{tpu_custom_call.1} parent=11 // pred_check_branch
          %127 = sbr.rel (%p125) target = $region16
        $region15: #{tpu_custom_call.1} parent=11 // pred_region
          %s129 = ssub.s32 96, 96
          %130 = vsyncadd [#allocation6], %s129
          %s132 = sshll.u32 [#allocation5], 4
          %s133 = int_to_ptr.vmem [resolvable:$true] %s132
          %135 = dma.hbm_to_vmem [thread:$0]  %s1, 96, %s133, [#allocation6]
        $region16: #{tpu_custom_call.1} parent=11 // pred_fallthru
          _
        // Predicated region
        $region17: #{tpu_custom_call.1} parent=11 // pred_check
          %p136 = pneg %p84
        $region18: #{tpu_custom_call.1} parent=11 // pred_check_branch
          %138 = sbr.rel (%p136) target = $region20
        $region19: #{tpu_custom_call.1} parent=11 // pred_region
          %s140 = ssub.s32 96, 96
          %141 = vsyncadd [#allocation6], %s140
          %s143 = sshll.u32 [#allocation7], 4
          %s144 = int_to_ptr.vmem [resolvable:$true] %s143
          %146 = dma.hbm_to_vmem [thread:$0]  %s2, 96, %s144, [#allocation6]
        $region20: #{tpu_custom_call.1} parent=11 // pred_fallthru
          _
      $region12: #{tpu_custom_call.1} parent=5 // pred_fallthru
        _
      %p147 = scmp.lt.s32.totalorder %s16, 4
      // Predicated region
      $region21: #{tpu_custom_call.1} parent=5 // pred_check
        %p148 = pneg %p147
      $region22: #{tpu_custom_call.1} parent=5 // pred_check_branch
        %150 = sbr.rel (%p148) target = $region24
      $region23: #{tpu_custom_call.1} parent=5 // pred_region
        // Predicated region
        $region25: #{tpu_custom_call.1} parent=23 // pred_check
          %p151 = pneg %p36
        $region26: #{tpu_custom_call.1} parent=23 // pred_check_branch
          %153 = sbr.rel (%p151) target = $region28
        $region27: #{tpu_custom_call.1} parent=23 // pred_region
          %s154 = sand.u32 %s26, 1
          %s155 = scalar_lea.sflag [#allocation3], %s154
          %s156 = sand.u32 %s26, 1
          %s157 = smul.addr %s156, 48
          %s158 = scalar_lea.vmem [#allocation2], %s157
          %s160 = ssub.s32 768, 768
          %161 = vsyncadd %s155, %s160
          %s162 = smul.addr %s16, 6
          %s163 = smul.addr %s162, 128
          %s164 = scalar_lea.hbm %s0, %s163
          %s166 = sshll.u32 %s158, 4
          %s167 = int_to_ptr.vmem [resolvable:$true] %s166
          %169 = dma.hbm_to_vmem [thread:$0]  %s164, 768, %s167, %s155
        $region28: #{tpu_custom_call.1} parent=23 // pred_fallthru
          _
      $region24: #{tpu_custom_call.1} parent=5 // pred_fallthru
        _
      %p170 = scmp.le.s32.totalorder 1, %s16
      %p171 = scmp.lt.s32.totalorder %s16, 5
      %p172 = pnand %p170, %p171
      %p173 = pneg %p172
      // Predicated region
      $region29: #{tpu_custom_call.1} parent=5 // pred_check
        _
      $region30: #{tpu_custom_call.1} parent=5 // pred_check_branch
        %175 = sbr.rel (%p172) target = $region32
      $region31: #{tpu_custom_call.1} parent=5 // pred_region
        %s176 = ssub.s32 %s16, 1
        %s177 = sand.u32 %s29, 1
        %s178 = scalar_lea.sflag [#allocation3], %s177
        %s179 = sand.u32 %s29, 1
        %s180 = smul.addr %s179, 48
        %s181 = scalar_lea.vmem [#allocation2], %s180
        // Predicated region
        $region33: #{tpu_custom_call.1} parent=31 // pred_check
          %p182 = pneg %p42
        $region34: #{tpu_custom_call.1} parent=31 // pred_check_branch
          %184 = sbr.rel (%p182) target = $region36
        $region35: #{tpu_custom_call.1} parent=31 // pred_region
          %185 = dma.done %s178, 768
        $region36: #{tpu_custom_call.1} parent=31 // pred_fallthru
          _
        // Predicated region
        $region37: #{tpu_custom_call.1} parent=31 // pred_check
          %p186 = pneg %p63
        $region38: #{tpu_custom_call.1} parent=31 // pred_check_branch
          %188 = sbr.rel (%p186) target = $region40
        $region39: #{tpu_custom_call.1} parent=31 // pred_region
          %189 = dma.done [#allocation6], 96
        $region40: #{tpu_custom_call.1} parent=31 // pred_fallthru
          _
        // Predicated region
        $region41: #{tpu_custom_call.1} parent=31 // pred_check
          %p190 = pneg %p84
        $region42: #{tpu_custom_call.1} parent=31 // pred_check_branch
          %192 = sbr.rel (%p190) target = $region44
        $region43: #{tpu_custom_call.1} parent=31 // pred_region
          %193 = dma.done [#allocation6], 96
        $region44: #{tpu_custom_call.1} parent=31 // pred_fallthru
          _
        %s194 = sand.u32 %s29, 1
        %s195 = scalar_lea.sflag [#allocation3], %s194
        %s196 = sand.u32 %s29, 1
        %s197 = smul.addr %s196, 48
        %s198 = scalar_lea.vmem [#allocation2], %s197
        %p199 = pneg %p42
        %p200 = pneg %p39
        %p201 = pneg %p63
        %p202 = pneg %p60
        %p203 = pneg %p84
        %p204 = pneg %p81
        %p205 = pneg %p110
        %p206 = pneg %p107
        %s207 = sand.u32 %s97, 1
        %s208 = scalar_lea.sflag [#allocation4], %s207
        %s209 = sand.u32 %s97, 1
        %s210 = smul.addr %s209, 48
        %s211 = scalar_lea.vmem [#allocation8], %s210
        %v212 = vld [vmem:[%s181] sm:$0xff]
        %v213 = vld [vmem:[%s181 + $0x8] sm:$0xff]
        %v214 = vld [vmem:[%s181 + $0x10] sm:$0xff]
        %v215 = vld [vmem:[%s181 + $0x18] sm:$0xff]
        %v216 = vld [vmem:[%s181 + $0x20] sm:$0xff]
        %v217 = vld [vmem:[%s181 + $0x28] sm:$0xff]
        %v218 = vld [vmem:[#allocation5] sm:$0x3f]
        %v219 = vld [vmem:[#allocation7] sm:$0x3f]
        %v221 = vlaneseq
        %v222 = vshrl.u32 %v221, 7
        %v223 = vsub.s32 0, %v222
        %v224 = vrot.slane %v219, %v223
        %v225 = vlaneseq
        %v226 = vshrl.u32 %v225, 7
        %v227 = vsub.s32 1, %v226
        %v228 = vrot.slane %v219, %v227
        %v229 = vlaneseq
        %v230 = vshrl.u32 %v229, 7
        %v231 = vsub.s32 2, %v230
        %v232 = vrot.slane %v219, %v231
        %v233 = vlaneseq
        %v234 = vshrl.u32 %v233, 7
        %v235 = vsub.s32 3, %v234
        %v236 = vrot.slane %v219, %v235
        %v237 = vlaneseq
        %v238 = vshrl.u32 %v237, 7
        %v239 = vsub.s32 4, %v238
        %v240 = vrot.slane %v219, %v239
        %v241 = vlaneseq
        %v242 = vshrl.u32 %v241, 7
        %v243 = vsub.s32 5, %v242
        %v244 = vrot.slane %v219, %v243
        %v251 = vsub.f32 %v212, %v224
        %v252 = vsub.f32 %v213, %v228
        %v253 = vsub.f32 %v214, %v232
        %v254 = vsub.f32 %v215, %v236
        %v255 = vsub.f32 %v216, %v240
        %v256 = vsub.f32 %v217, %v244
        %v258 = vlaneseq
        %v259 = vshrl.u32 %v258, 7
        %v260 = vsub.s32 0, %v259
        %v261 = vrot.slane %v218, %v260
        %v262 = vlaneseq
        %v263 = vshrl.u32 %v262, 7
        %v264 = vsub.s32 1, %v263
        %v265 = vrot.slane %v218, %v264
        %v266 = vlaneseq
        %v267 = vshrl.u32 %v266, 7
        %v268 = vsub.s32 2, %v267
        %v269 = vrot.slane %v218, %v268
        %v270 = vlaneseq
        %v271 = vshrl.u32 %v270, 7
        %v272 = vsub.s32 3, %v271
        %v273 = vrot.slane %v218, %v272
        %v274 = vlaneseq
        %v275 = vshrl.u32 %v274, 7
        %v276 = vsub.s32 4, %v275
        %v277 = vrot.slane %v218, %v276
        %v278 = vlaneseq
        %v279 = vshrl.u32 %v278, 7
        %v280 = vsub.s32 5, %v279
        %v281 = vrot.slane %v218, %v280
        %v288 = vmul.f32 %v261, %v251
        %v289 = vmul.f32 %v265, %v252
        %v290 = vmul.f32 %v269, %v253
        %v291 = vmul.f32 %v273, %v254
        %v292 = vmul.f32 %v277, %v255
        %v293 = vmul.f32 %v281, %v256
        %v294 = vxor.u32 %v288, 2147483648
        %v295 = vxor.u32 %v289, 2147483648
        %v296 = vxor.u32 %v290, 2147483648
        %v297 = vxor.u32 %v291, 2147483648
        %v298 = vxor.u32 %v292, 2147483648
        %v299 = vxor.u32 %v293, 2147483648
        %v300 = vmul.f32 %v294, 1.442695
        %v301 = vpow.pop %v300
        %v302 = vmul.f32 %v295, 1.442695
        %v303 = vpow.pop %v302
        %v304 = vmul.f32 %v296, 1.442695
        %v305 = vpow.pop %v304
        %v306 = vmul.f32 %v297, 1.442695
        %v307 = vpow.pop %v306
        %v308 = vmul.f32 %v298, 1.442695
        %v309 = vpow.pop %v308
        %v310 = vmul.f32 %v299, 1.442695
        %v311 = vpow.pop %v310
        %v312 = vadd.f32 %v301, 1.0
        %v313 = vadd.f32 %v303, 1.0
        %v314 = vadd.f32 %v305, 1.0
        %v315 = vadd.f32 %v307, 1.0
        %v316 = vadd.f32 %v309, 1.0
        %v317 = vadd.f32 %v311, 1.0
        %v318 = vrcp.pop %v312
        %v319 = vmul.f32 1.0, %v318
        %v320 = vrcp.pop %v313
        %v321 = vmul.f32 1.0, %v320
        %v322 = vrcp.pop %v314
        %v323 = vmul.f32 1.0, %v322
        %v324 = vrcp.pop %v315
        %v325 = vmul.f32 1.0, %v324
        %v326 = vrcp.pop %v316
        %v327 = vmul.f32 1.0, %v326
        %v328 = vrcp.pop %v317
        %v329 = vmul.f32 1.0, %v328
        %330 = vst [vmem:[%s211] sm:$0xff] %v319
        %331 = vst [vmem:[%s211 + $0x8] sm:$0xff] %v321
        %332 = vst [vmem:[%s211 + $0x10] sm:$0xff] %v323
        %333 = vst [vmem:[%s211 + $0x18] sm:$0xff] %v325
        %334 = vst [vmem:[%s211 + $0x20] sm:$0xff] %v327
        %335 = vst [vmem:[%s211 + $0x28] sm:$0xff] %v329
        %s336 = sand.u32 %s97, 1
        %s337 = scalar_lea.sflag [#allocation4], %s336
        %s338 = sand.u32 %s97, 1
        %s339 = smul.addr %s338, 48
        %s340 = scalar_lea.vmem [#allocation8], %s339
        // Predicated region
        $region45: #{tpu_custom_call.1} parent=31 // pred_check
          %p341 = pneg %p107
        $region46: #{tpu_custom_call.1} parent=31 // pred_check_branch
          %343 = sbr.rel (%p341) target = $region48
        $region47: #{tpu_custom_call.1} parent=31 // pred_region
          %s345 = ssub.s32 768, 768
          %346 = vsyncadd %s337, %s345
          %s347 = smul.addr %s21, 6
          %s348 = smul.addr %s347, 128
          %s349 = scalar_lea.hbm %s3, %s348
          %s351 = sshll.u32 %s340, 4
          %s352 = int_to_ptr.vmem [resolvable:$true] %s351
          %354 = dma.vmem_to_hbm [thread:$0]  %s352, 768, %s349, %s337
        $region48: #{tpu_custom_call.1} parent=31 // pred_fallthru
          _
      $region32: #{tpu_custom_call.1} parent=5 // pred_fallthru
        _
      %p355 = scmp.le.s32.totalorder 2, %s16
      // Predicated region
      $region49: #{tpu_custom_call.1} parent=5 // pred_check
        %p356 = pneg %p355
      $region50: #{tpu_custom_call.1} parent=5 // pred_check_branch
        %358 = sbr.rel (%p356) target = $region52
      $region51: #{tpu_custom_call.1} parent=5 // pred_region
        %s359 = ssub.s32 %s16, 2
        // Predicated region
        $region53: #{tpu_custom_call.1} parent=51 // pred_check
          %p360 = pneg %p113
        $region54: #{tpu_custom_call.1} parent=51 // pred_check_branch
          %362 = sbr.rel (%p360) target = $region56
        $region55: #{tpu_custom_call.1} parent=51 // pred_region
          %s363 = sand.u32 %s98, 1
          %s364 = scalar_lea.sflag [#allocation4], %s363
          %s365 = sand.u32 %s98, 1
          %s366 = smul.addr %s365, 48
          %s367 = scalar_lea.vmem [#allocation8], %s366
          %368 = dma.done %s364, 768
        $region56: #{tpu_custom_call.1} parent=51 // pred_fallthru
          _
      $region52: #{tpu_custom_call.1} parent=5 // pred_fallthru
        _
    $region6: #{tpu_custom_call.1} parent=1 // loop_footer
      %s20 = sadd.s32 1, %s16
    $region7: #{tpu_custom_call.1} parent=1 // loop_footer_branch
      %15 = sbr.rel target = $region3
    $region8: #{tpu_custom_call.1} parent=1 // loop_exit
      _
    %369 = vsyncpa [#allocation3], 1
    %s370 = scalar_lea.sflag [#allocation3], 1
    %371 = vsyncpa %s370, 1
    %372 = vsyncpa [#allocation6], 1
    %373 = vsyncpa [#allocation4], 1
    %s374 = scalar_lea.sflag [#allocation4], 1
    %375 = vsyncpa %s374, 1

</llo_original>
